<compile_context>
chip_gen: v6e
topology: v6e:2x2x1
jax: 0.10.0
libtpu: 0.0.40
codegen_flags: <defaults>
</compile_context>

<pallas_src>
import random
from functools import partial

import numpy as np

import jax
import jax.numpy as jnp
from jax.experimental import pallas as pl
from jax.experimental.pallas import tpu as pltpu


# ----------------------------------------------------------------------------
# Pallas kernel: out = node + mask @ embed   (blocked K-reduction)
# ----------------------------------------------------------------------------
def mean_agg_kernel(mask_ref, embed_ref, node_ref, out_ref, acc_ref):
    k = pl.program_id(2)

    @pl.when(k == 0)
    def _():
        # Seed the accumulator with the node's own features: folds the
        # `node_feats + ...` add into the reduction (no separate VPU pass).
        acc_ref[...] = node_ref[...].astype(jnp.float32)

    # bf16 x bf16 -> f32 on the MXU.
    acc_ref[...] += jnp.dot(mask_ref[...], embed_ref[...],
                            preferred_element_type=jnp.float32)

    @pl.when(k == pl.num_programs(2) - 1)
    def _():
        out_ref[...] = acc_ref[...].astype(out_ref.dtype)


def _round_up(x, m):
    return ((x + m - 1) // m) * m


@partial(jax.jit, static_argnames=("tm", "tn", "tk"))
def mean_aggregate_pallas(mask, embed_matrix, node_feats,
                          tm=256, tn=512, tk=512):
    """mask (B,U), embed_matrix (U,D), node_feats (B,D) -> (B,D) float32."""
    B, U = mask.shape
    Ue, D = embed_matrix.shape
    assert Ue == U and node_feats.shape == (B, D)

    # MXU-friendly dtypes: bf16 operands, f32 accumulation / bias / output.
    mask = jnp.asarray(mask, jnp.bfloat16)
    embed = jnp.asarray(embed_matrix, jnp.bfloat16)
    node = jnp.asarray(node_feats, jnp.float32)

    # Adaptive tiles: use the full extent when the dim fits in one tile
    # (exempt from the (8,128) block rule -> no padding); otherwise a
    # hardware-aligned tile + minimal zero padding.
    def _tile(dim, max_tile):
        if dim <= max_tile:
            return dim, dim
        return max_tile, _round_up(dim, max_tile)

    TM, Bp = _tile(B, tm)
    TN, Dp = _tile(D, tn)
    TK, Up = _tile(U, tk)

    if (Bp, Up) != (B, U):
        mask = jnp.pad(mask, ((0, Bp - B), (0, Up - U)))
    if (Up, Dp) != (U, D):
        embed = jnp.pad(embed, ((0, Up - U), (0, Dp - D)))
    if (Bp, Dp) != (B, D):
        node = jnp.pad(node, ((0, Bp - B), (0, Dp - D)))

    grid = (Bp // TM, Dp // TN, Up // TK)

    out = pl.pallas_call(
        mean_agg_kernel,
        out_shape=jax.ShapeDtypeStruct((Bp, Dp), jnp.float32),
        grid_spec=pltpu.PrefetchScalarGridSpec(
            num_scalar_prefetch=0,
            grid=grid,
            in_specs=[
                pl.BlockSpec((TM, TK), lambda i, j, k: (i, k)),   # mask
                pl.BlockSpec((TK, TN), lambda i, j, k: (k, j)),   # embed
                pl.BlockSpec((TM, TN), lambda i, j, k: (i, j)),   # node feats
            ],
            out_specs=pl.BlockSpec((TM, TN), lambda i, j, k: (i, j)),
            scratch_shapes=[pltpu.VMEM((TM, TN), jnp.float32)],
        ),
        compiler_params=pltpu.CompilerParams(
            dimension_semantics=("parallel", "parallel", "arbitrary"),
            vmem_limit_bytes=32 * 1024 * 1024,
        ),
        cost_estimate=pl.CostEstimate(
            flops=2 * Bp * Up * Dp,
            transcendentals=0,
            bytes_accessed=(mask.size * 2 + embed.size * 2
                            + node.size * 4 + Bp * Dp * 4),
        ),
    )(mask, embed, node)

    if (Bp, Dp) != (B, D):
        out = out[:B, :D]
    return out


# ----------------------------------------------------------------------------
# MeanAggregator: host-side graph glue + Pallas hot path
# ----------------------------------------------------------------------------
class MeanAggregatorPallas:
    def __init__(self, features, gcn=False):
        self.features = features  # fn: int32 node ids -> float32 features
        self.gcn = gcn

    def _build_mask(self, nodes, to_neighs, num_sample):
        _set = set
        if num_sample is not None:
            _sample = random.sample
            samp_neighs = [
                _set(_sample(sorted(to_neigh), num_sample))
                if len(to_neigh) >= num_sample else to_neigh
                for to_neigh in to_neighs
            ]
        else:
            samp_neighs = to_neighs
        if self.gcn:
            samp_neighs = [samp_neigh | {nodes[i]}
                           for i, samp_neigh in enumerate(samp_neighs)]

        unique_nodes_list = list(set.union(*samp_neighs))
        unique_nodes = {n: i for i, n in enumerate(unique_nodes_list)}

        B, U = len(samp_neighs), len(unique_nodes_list)
        degs = np.array([len(sn) for sn in samp_neighs], dtype=np.int64)

        # Reference quirk: the normalization loop never finalizes the LAST
        # row, so its weights stay 1.0 (sum instead of mean). Replicated.
        row_w = 1.0 / degs.astype(np.float32)
        row_w[-1] = 1.0

        rows = np.repeat(np.arange(B, dtype=np.int32), degs)
        cols = np.fromiter(
            (unique_nodes[n] for sn in samp_neighs for n in sn),
            dtype=np.int32, count=int(degs.sum()))

        mask = np.zeros((B, U), dtype=np.float32)
        mask[rows, cols] = row_w[rows]          # COO -> dense (sets: no dups)
        return mask, unique_nodes_list

    def forward(self, nodes, to_neighs, num_sample=10):
        mask, unique_nodes_list = self._build_mask(nodes, to_neighs, num_sample)
        nodes = list(nodes)
        embed_matrix = self.features(jnp.asarray(unique_nodes_list, jnp.int32))
        node_feats = self.features(jnp.asarray(nodes, jnp.int32))
        return mean_aggregate_pallas(jnp.asarray(mask), embed_matrix, node_feats)


# ----------------------------------------------------------------------------
# Demo / self-check
# ----------------------------------------------------------------------------
if __name__ == "__main__":
    random.seed(0)

    # --- 1) Direct kernel check against a pure-JAX reference ---------------
    B, U, D = 8, 48, 32
    k0, k1, k2 = jax.random.split(jax.random.PRNGKey(0), 3)
    mask_t = jax.random.uniform(k0, (B, U), jnp.float32) * 0.25
    embed_t = jax.random.normal(k1, (U, D), jnp.float32)
    node_t = jax.random.normal(k2, (B, D), jnp.float32)

    out_direct = jax.block_until_ready(
        mean_aggregate_pallas(mask_t, embed_t, node_t))
    ref = node_t + mask_t @ embed_t
    np.testing.assert_allclose(np.asarray(out_direct), np.asarray(ref),
                               rtol=3e-2, atol=3e-2)  # bf16 operands

    # --- 2) Full module path -------------------------------------------------
    NUM_NODES = 20
    FEAT_DIM = 32
    BATCH = 8

    feat_table = jax.random.normal(jax.random.PRNGKey(0),
                                   (NUM_NODES, FEAT_DIM), dtype=jnp.float32)

    def features(ids):
        return feat_table[ids]

    nodes = list(range(BATCH))
    to_neighs = []
    for i in range(BATCH):
        deg = 4 + (i * 3) % 12  # some sets >= num_sample=10 to exercise sampling
        to_neighs.append(set((i + 1 + k * (i + 2)) % NUM_NODES for k in range(deg)))

    agg = MeanAggregatorPallas(features, gcn=False)
    out = jax.block_until_ready(agg.forward(nodes, to_neighs, num_sample=10))

    assert out.shape == (BATCH, FEAT_DIM)
    assert out.dtype == jnp.float32
    assert bool(jnp.all(jnp.isfinite(out)))
    print("KERNEL_OK")
</pallas_src>

<mosaic_0001>
module attributes {stable_mosaic.version = 11 : i64} {
  func.func @mean_agg_kernel(%arg0: i32, %arg1: i32, %arg2: i32, %arg3: memref<8x48xbf16, #tpu.memory_space<vmem>>, %arg4: memref<48x32xbf16, #tpu.memory_space<vmem>>, %arg5: memref<8x32xf32, #tpu.memory_space<vmem>>, %arg6: memref<8x32xf32, #tpu.memory_space<vmem>>, %arg7: memref<8x32xf32, #tpu.memory_space<vmem>>) attributes {dimension_semantics = [#tpu.dimension_semantics<parallel>, #tpu.dimension_semantics<parallel>, #tpu.dimension_semantics<arbitrary>], iteration_bounds = array<i64: 1, 1, 1>, scalar_prefetch = 0 : i64, scratch_operands = 1 : i64, tpu.core_type = #tpu.core_type<tc>, window_params = [{transform_indices = @transform_0, window_bounds = array<i64: 8, 48>}, {transform_indices = @transform_1, window_bounds = array<i64: 48, 32>}, {transform_indices = @transform_2, window_bounds = array<i64: 8, 32>}, {transform_indices = @transform_3, window_bounds = array<i64: 8, 32>}]} {
    %c0_i32 = arith.constant 0 : i32
    %0 = arith.cmpi eq, %arg2, %c0_i32 : i32
    %1 = arith.extui %0 : i1 to i32
    %c0_i32_0 = arith.constant 0 : i32
    %2 = arith.cmpi ne, %1, %c0_i32_0 : i32
    scf.if %2 {
      %c0_10 = arith.constant 0 : index
      %c0_11 = arith.constant 0 : index
      %12 = vector.load %arg5[%c0_10, %c0_11] : memref<8x32xf32, #tpu.memory_space<vmem>>, vector<8x32xf32>
      %c0_12 = arith.constant 0 : index
      %c0_13 = arith.constant 0 : index
      %13 = vector.load %arg7[%c0_12, %c0_13] : memref<8x32xf32, #tpu.memory_space<vmem>>, vector<8x32xf32>
      tpu.vector_store %arg7[%c0_12, %c0_13], %12 {strides = array<i32>} : memref<8x32xf32, #tpu.memory_space<vmem>>, vector<8x32xf32>,
    } else {
    }
    %c0 = arith.constant 0 : index
    %c0_1 = arith.constant 0 : index
    %3 = vector.load %arg7[%c0, %c0_1] : memref<8x32xf32, #tpu.memory_space<vmem>>, vector<8x32xf32>
    %c0_2 = arith.constant 0 : index
    %c0_3 = arith.constant 0 : index
    %4 = vector.load %arg3[%c0_2, %c0_3] : memref<8x48xbf16, #tpu.memory_space<vmem>>, vector<8x48xbf16>
    %c0_4 = arith.constant 0 : index
    %c0_5 = arith.constant 0 : index
    %5 = vector.load %arg4[%c0_4, %c0_5] : memref<48x32xbf16, #tpu.memory_space<vmem>>, vector<48x32xbf16>
    %cst = arith.constant dense<0.000000e+00> : vector<8x32xf32>
    %6 = tpu.matmul %4, %5, %cst {dimension_numbers = #tpu.dot_dimension_numbers<[1], [0], [0], [1], [0, 0, 1, 1], [], []>} : vector<8x48xbf16>, vector<48x32xbf16>, vector<8x32xf32> -> vector<8x32xf32>
    %7 = arith.addf %3, %6 : vector<8x32xf32>
    %c0_6 = arith.constant 0 : index
    %c0_7 = arith.constant 0 : index
    %8 = vector.load %arg7[%c0_6, %c0_7] : memref<8x32xf32, #tpu.memory_space<vmem>>, vector<8x32xf32>
    tpu.vector_store %arg7[%c0_6, %c0_7], %7 {strides = array<i32>} : memref<8x32xf32, #tpu.memory_space<vmem>>, vector<8x32xf32>,
    %c0_i32_8 = arith.constant 0 : i32
    %9 = arith.cmpi eq, %arg2, %c0_i32_8 : i32
    %10 = arith.extui %9 : i1 to i32
    %c0_i32_9 = arith.constant 0 : i32
    %11 = arith.cmpi ne, %10, %c0_i32_9 : i32
    scf.if %11 {
      %c0_10 = arith.constant 0 : index
      %c0_11 = arith.constant 0 : index
      %12 = vector.load %arg7[%c0_10, %c0_11] : memref<8x32xf32, #tpu.memory_space<vmem>>, vector<8x32xf32>
      %c0_12 = arith.constant 0 : index
      %c0_13 = arith.constant 0 : index
      %13 = vector.load %arg6[%c0_12, %c0_13] : memref<8x32xf32, #tpu.memory_space<vmem>>, vector<8x32xf32>
      tpu.vector_store %arg6[%c0_12, %c0_13], %12 {strides = array<i32>} : memref<8x32xf32, #tpu.memory_space<vmem>>, vector<8x32xf32>,
    } else {
    }
    return
  }
  func.func @transform_0(%arg0: i32, %arg1: i32, %arg2: i32) -> (i32, i32) {
    %c0_i32 = arith.constant 0 : i32
    return %arg0, %arg2 : i32, i32
  }
  func.func @transform_1(%arg0: i32, %arg1: i32, %arg2: i32) -> (i32, i32) {
    %c0_i32 = arith.constant 0 : i32
    return %arg2, %arg1 : i32, i32
  }
  func.func @transform_2(%arg0: i32, %arg1: i32, %arg2: i32) -> (i32, i32) {
    %c0_i32 = arith.constant 0 : i32
    return %arg0, %arg1 : i32, i32
  }
  func.func @transform_3(%arg0: i32, %arg1: i32, %arg2: i32) -> (i32, i32) {
    %c0_i32 = arith.constant 0 : i32
    return %arg0, %arg1 : i32, i32
  }
}

</mosaic_0001>

<llo_original>
// kernel: mean_aggregate_pallas.1
$region0: #{mean_aggregate_pallas.1}
  #allocation0 [shape = 'u32[]', space=smem, size = 0x4, offset = 0x4, fixed_abs, tag = 'smem constant byte address 0x4 - core index']
  #allocation1 [shape = 'u32[144,128]{1,0:T(1,128)}', space=vmem, size = 0x12000, scoped, tag = 'internal scratch']
  #allocation2 [shape = 'f32[8,32]{1,0:T(8,128)}', space=vmem, size = 0x1000, scoped, tag = 'scratch operand']
  %s0 = inlined_call_operand.vmem [shape: bf16[8,48], index: 0, kind: input, shape index: {}]
  %s1 = inlined_call_operand.vmem [shape: bf16[48,32], index: 1, kind: input, shape index: {}]
  %s2 = inlined_call_operand.vmem [shape: f32[8,32], index: 2, kind: input, shape index: {}]
  %s3 = inlined_call_operand.hbm [shape: f32[8,32], index: 3, kind: output, shape index: {}]
  %s4 = sld [smem:[#allocation0]]
  $region30: #{mean_aggregate_pallas.1} parent=0
    _
  %s6 = ssub.s32 1, %s4
  %s7 = scalar_select 0, %s6, %s4
  $region1: #{mean_aggregate_pallas.1} parent=0
    #allocation3 [shape = 'u8[4096]{0}', space=vmem, size = 0x1000, scoped, tag = 'output window, operand 0, single buffered']
    #allocation4 [shape = 's32[1]{0}', space=sflag, size = 0x4, scoped, tag = 'scoped memory for mean_aggregate_pallas.1']
    %8 = vsyncpa [#allocation4], 0
    // Predicated region
    $region2: #{mean_aggregate_pallas.1} parent=1 // pred_check
      _
    $region3: #{mean_aggregate_pallas.1} parent=1 // pred_check_branch
      %10 = sbr.rel (0) target = $region5
    $region4: #{mean_aggregate_pallas.1} parent=1 // pred_region
      _
    $region5: #{mean_aggregate_pallas.1} parent=1 // pred_fallthru
      _
    // Predicated region
    $region6: #{mean_aggregate_pallas.1} parent=1 // pred_check
      _
    $region7: #{mean_aggregate_pallas.1} parent=1 // pred_check_branch
      %12 = sbr.rel (0) target = $region9
    $region8: #{mean_aggregate_pallas.1} parent=1 // pred_region
      _
    $region9: #{mean_aggregate_pallas.1} parent=1 // pred_fallthru
      _
    // Predicated region
    $region10: #{mean_aggregate_pallas.1} parent=1 // pred_check
      _
    $region11: #{mean_aggregate_pallas.1} parent=1 // pred_check_branch
      %14 = sbr.rel (0) target = $region13
    $region12: #{mean_aggregate_pallas.1} parent=1 // pred_region
      _
    $region13: #{mean_aggregate_pallas.1} parent=1 // pred_fallthru
      _
    %p16 = scmp.eq.s32.totalorder 0, 0
    // Predicated region
    $region14: #{mean_aggregate_pallas.1} parent=1 // pred_check
      %p17 = pneg %p16
    $region15: #{mean_aggregate_pallas.1} parent=1 // pred_check_branch
      %19 = sbr.rel (%p17) target = $region17
    $region16: #{mean_aggregate_pallas.1} parent=1 // pred_region
      %v20 = vld [vmem:[%s2] sm:$0xff]
      %vm21 = vcmask 261120
      %22 = vst.msk [vmem:[#allocation2] sm:$0xff] %vm21, %v20
    $region17: #{mean_aggregate_pallas.1} parent=1 // pred_fallthru
      _
    %v23 = vld [vmem:[#allocation2] sm:$0xff]
    %v24 = vld [vmem:[%s0] sm:$0xf]
    %v25 = vld [vmem:[%s1] sm:$0xf]
    %v26 = vld [vmem:[%s1 + $0x4] sm:$0xf]
    %v27 = vld [vmem:[%s1 + $0x8] sm:$0xf]
    %v28 = vld [vmem:[%s1 + $0xc] sm:$0xf]
    %v29 = vld [vmem:[%s1 + $0x10] sm:$0xf]
    %v30 = vld [vmem:[%s1 + $0x14] sm:$0xf]
    %v37 = vunpack.c.l.b16 %v25
    %v38 = vunpack.c.l.b16 %v26
    %v39 = vunpack.c.l.b16 %v27
    %v40 = vunpack.c.l.b16 %v28
    %v41 = vunpack.c.l.b16 %v29
    %v42 = vunpack.c.l.b16 %v30
    %v43 = vpack.c.b16 %v38, %v37
    %v44 = vpack.c.b16 %v40, %v39
    %v45 = vpack.c.b16 %v42, %v41
    %vm49 = vcmask 392192
    %v51 = vsel %vm49, %v24, 0
    %53 = vmatprep.subr.bf16.mxu0 0
    %54 = vmatpush1.bf16.msra.mxu0 0
    %55 = vmatprep.subr.bf16.mxu0 0
    %56 = vmatpush1.bf16.msra.mxu0 0
    %57 = vmatprep.subr.bf16.mxu0 0
    %58 = vmatpush1.bf16.msra.mxu0 0
    %59 = vmatprep.subr.bf16.mxu0 0
    %60 = vmatpush1.bf16.msra.mxu0 0
    %61 = vmatprep.subr.bf16.mxu0 0
    %62 = vmatpush1.bf16.msra.mxu0 0
    %63 = vmatprep.subr.bf16.mxu0 0
    %64 = vmatpush1.bf16.msra.mxu0 %v45
    %65 = vmatprep.subr.bf16.mxu0 0
    %66 = vmatpush1.bf16.msra.mxu0 %v44
    %67 = vmatprep.subr.bf16.mxu0 0
    %68 = vmatpush1.bf16.msra.mxu0 %v43
    %69 = vmatprep.subr.bf16.mxu0 0
    %70 = vmatpush2.bf16.msra.mxu0 0
    %71 = vmatprep.subr.bf16.mxu0 0
    %72 = vmatpush2.bf16.msra.mxu0 0
    %73 = vmatprep.subr.bf16.mxu0 0
    %74 = vmatpush2.bf16.msra.mxu0 0
    %75 = vmatprep.subr.bf16.mxu0 0
    %76 = vmatpush2.bf16.msra.mxu0 0
    %77 = vmatprep.subr.bf16.mxu0 0
    %78 = vmatpush2.bf16.msra.mxu0 0
    %79 = vmatprep.subr.bf16.mxu0 0
    %80 = vmatpush2.bf16.msra.mxu0 0
    %81 = vmatprep.subr.bf16.mxu0 0
    %82 = vmatpush2.bf16.msra.mxu0 0
    %83 = vmatprep.subr.bf16.mxu0 0
    %84 = vmatpush2.bf16.msra.mxu0 0
    %85 = vmatprep.mubr.bf16.mxu0 0
    %86 = vmatmul.mubr.bf16.gmra.mxu0 %v51
    %v87 = vpop.f32.mrf.mxu0
    %v88 = vadd.f32 0.0, %v87
    %v89 = vpop.f32.mrf.mxu0
    %v90 = vpop.f32.mrf.mxu0
    %v91 = vpop.f32.mrf.mxu0
    %92 = vdwg.mxu0
    %v93 = vadd.f32 %v23, %v88
    %vm94 = vcmask 261120
    %95 = vst.msk [vmem:[#allocation2] sm:$0xff] %vm94, %v93
    // Predicated region
    $region18: #{mean_aggregate_pallas.1} parent=1 // pred_check
      %p96 = pneg %p16
    $region19: #{mean_aggregate_pallas.1} parent=1 // pred_check_branch
      %98 = sbr.rel (%p96) target = $region21
    $region20: #{mean_aggregate_pallas.1} parent=1 // pred_region
      %v99 = vld [vmem:[#allocation2] sm:$0xff]
      %100 = vst.msk [vmem:[#allocation3] sm:$0xff] %vm94, %v99
    $region21: #{mean_aggregate_pallas.1} parent=1 // pred_fallthru
      _
    // Predicated region
    $region22: #{mean_aggregate_pallas.1} parent=1 // pred_check
      _
    $region23: #{mean_aggregate_pallas.1} parent=1 // pred_check_branch
      %102 = sbr.rel (0) target = $region25
    $region24: #{mean_aggregate_pallas.1} parent=1 // pred_region
      %s104 = ssub.s32 128, 128
      %105 = vsyncadd [#allocation4], %s104
      %s107 = sshll.u32 [#allocation3], 4
      %s108 = int_to_ptr.vmem [resolvable:$true] %s107
      %110 = dma.vmem_to_hbm [thread:$0]  %s108, 128, %s3, [#allocation4]
    $region25: #{mean_aggregate_pallas.1} parent=1 // pred_fallthru
      _
    // Predicated region
    $region26: #{mean_aggregate_pallas.1} parent=1 // pred_check
      _
    $region27: #{mean_aggregate_pallas.1} parent=1 // pred_check_branch
      %112 = sbr.rel (0) target = $region29
    $region28: #{mean_aggregate_pallas.1} parent=1 // pred_region
      %113 = dma.done [#allocation4], 128
    $region29: #{mean_aggregate_pallas.1} parent=1 // pred_fallthru
      _
    %114 = vsyncpa [#allocation4], 1

</llo_original>
